<compile_context>
chip_gen: v6e
topology: v6e:2x2x1
jax: 0.10.0
libtpu: 0.0.40
codegen_flags: <defaults>
</compile_context>

<pallas_src>
import functools

import jax
import jax.numpy as jnp
from jax.experimental import pallas as pl
from jax.experimental.pallas import tpu as pltpu


def _rope_qk_kernel(q_ref, k_ref, tab_ref, oq_ref, ok_ref, *, seg):
    """Fused RoPE for q and k tiles.

    q_ref  : [1, seq_tile, Hq', W]   (W = lane width, head_dim mapped to lanes)
    k_ref  : [1, seq_tile, Hk', W]
    tab_ref: [2, seq_tile, 1, W]     row 0 = cos, row 1 = sign-folded sin
    seg    : head_dim segment length along the lane axis (== W unless packed)
    """
    d_half = seg // 2
    cos = tab_ref[0]   # [seq_tile, 1, W] -> broadcasts over the head axis (VMEM)
    sin = tab_ref[1]   # [seq_tile, 1, W] sign-folded: (-sin_half, +sin_half)

    def rope(x):
        w = x.shape[-1]
        # rotate_half(x) * sin == roll(x, D//2) * sin_signed (roll runs on the XLU)
        fwd = pltpu.roll(x, shift=d_half, axis=x.ndim - 1)
        if seg == w:
            rot = fwd
        else:
            # packed heads (D < 128): per-D-segment half-swap via two rolls + mask
            bwd = pltpu.roll(x, shift=w - d_half, axis=x.ndim - 1)
            lane = jax.lax.broadcasted_iota(jnp.int32, x.shape, x.ndim - 1)
            rot = jnp.where((lane % seg) < d_half, bwd, fwd)
        return x * cos + rot * sin

    oq_ref[0] = rope(q_ref[0]).astype(oq_ref.dtype)
    ok_ref[0] = rope(k_ref[0]).astype(ok_ref.dtype)


def _vmem_capacity_bytes():
    try:
        return int(pltpu.get_tpu_info().vmem_capacity_bytes)
    except Exception:
        return 64 << 20   # conservative default = v7x per-TensorCore VMEM


def _choose_seq_tile(S, B, hq, hk, W, itemsize, vmem_cap, target_q_bytes):
    """Largest divisor of S whose double-buffered blocks fit VMEM and stay near
    the per-generation block-size target.  No (8,128) constraint applies to the
    seq axis with the (1, seq_tile, H, W) block layout, so seq_tile=1 is always a
    safe fallback (no whole-sequence VMEM blow-up for prime S / odd head counts)."""
    unit = 8 * max(1, 4 // max(1, itemsize))       # dtype-aware sublane packing unit
    pad = lambda n: ((n + unit - 1) // unit) * unit
    # q + oq + k + ok + (cos,sin), with VMEM sublane padding, double-buffered.
    per_seq = (2 * pad(hq) + 2 * pad(hk) + 2 * pad(1)) * W * itemsize
    step_bytes = lambda t: 2 * t * per_seq

    divisors = [t for t in range(1, S + 1) if S % t == 0]
    fit = [t for t in divisors if step_bytes(t) <= int(vmem_cap * 0.55)] or [1]
    capped = [t for t in fit if t * hq * W * itemsize <= target_q_bytes] or [min(fit)]
    # Prefer >=2 total grid steps (keeps both v7x TensorCores busy), then larger tiles.
    return max(capped, key=lambda t: ((S // t) * B >= 2, t % 8 == 0, t))


def _apply_rope_fused(q, k, tab, *, seq_tile=None, donate_qk=False):
    """q: [B,S,Hq,D], k: [B,S,Hk,D]; tab: [2,S,D] = stacked (cos, sign-folded sin)."""
    B, S, Hq, D = q.shape
    Bk, Sk, Hk, Dk = k.shape
    assert (Bk, Sk, Dk) == (B, S, D), "q/k batch, seq_len and head_dim must match"
    assert q.dtype == k.dtype, "q and k must share a dtype"
    assert tab.shape == (2, S, D)
    itemsize = jnp.dtype(q.dtype).itemsize

    # Lane packing: keep the lane axis 128-dense when head_dim < 128 by packing
    # P = 128 // D whole heads per lane row (needs head counts divisible by P).
    P = 1
    if D < 128 and 128 % D == 0 and Hq % (128 // D) == 0 and Hk % (128 // D) == 0:
        P = 128 // D
    # TODO(synk): head_dim < 128 with head counts not divisible by 128//D keeps a
    # partially-masked lane axis (correct, just not lane-dense).
    W = P * D
    hq, hk = Hq // P, Hk // P

    q_p = q if P == 1 else q.reshape(B, S, hq, W)                    # free reshape
    k_p = k if P == 1 else k.reshape(B, S, hk, W)                    # free reshape
    tab = tab.astype(q.dtype)
    tab_p = (tab if P == 1 else jnp.tile(tab, (1, 1, P))).reshape(2, S, 1, W)

    vmem_cap = _vmem_capacity_bytes()
    # ~4 MiB q blocks on 128-MiB-VMEM chips (v5e/v6e), ~2 MiB on v7x (64 MiB/TC).
    target_q_bytes = (4 << 20) if vmem_cap >= (100 << 20) else (2 << 20)
    if seq_tile is None:
        seq_tile = _choose_seq_tile(S, B, hq, hk, W, itemsize, vmem_cap, target_q_bytes)
    assert S % seq_tile == 0, "seq_tile must divide seq_len"

    unit = 8 * max(1, 4 // max(1, itemsize))
    pad = lambda n: ((n + unit - 1) // unit) * unit
    step_bytes = 2 * seq_tile * (2 * pad(hq) + 2 * pad(hk) + 2 * pad(1)) * W * itemsize
    vmem_limit = int(min(vmem_cap * 0.9, max(step_bytes + (8 << 20), 32 << 20)))

    # Batch innermost: the cos/sin block index is constant across consecutive
    # steps, so the table tile stays VMEM-resident (no re-DMA per batch element).
    grid = (S // seq_tile, B)

    kernel = functools.partial(_rope_qk_kernel, seg=D)

    out_q, out_k = pl.pallas_call(
        kernel,
        out_shape=(jax.ShapeDtypeStruct(q_p.shape, q.dtype),
                   jax.ShapeDtypeStruct(k_p.shape, k.dtype)),
        grid=grid,
        in_specs=[
            pl.BlockSpec((1, seq_tile, hq, W), lambda s, b: (b, s, 0, 0)),
            pl.BlockSpec((1, seq_tile, hk, W), lambda s, b: (b, s, 0, 0)),
            pl.BlockSpec((2, seq_tile, 1, W), lambda s, b: (0, s, 0, 0)),
        ],
        out_specs=(
            pl.BlockSpec((1, seq_tile, hq, W), lambda s, b: (b, s, 0, 0)),
            pl.BlockSpec((1, seq_tile, hk, W), lambda s, b: (b, s, 0, 0)),
        ),
        compiler_params=pltpu.CompilerParams(
            dimension_semantics=("parallel", "parallel"),
            vmem_limit_bytes=vmem_limit,
        ),
        # Optional in-place update when the caller donates q/k buffers.
        input_output_aliases=({0: 0, 1: 1} if donate_qk else {}),
    )(q_p, k_p, tab_p)

    return out_q.reshape(B, S, Hq, D), out_k.reshape(B, S, Hk, D)


class TransformerRotaryEmbeddingPallas:
    """JAX/Pallas port of TransformerRotaryEmbedding (forward pass)."""

    def __init__(self, head_dim: int, max_len: int, base: int = 10000,
                 dtype=jnp.float32, seq_tile=None, donate_qk: bool = False):
        self.head_dim = head_dim
        self.max_len = max_len
        self.base = base
        self.dtype = dtype
        self.seq_tile = seq_tile
        self.donate_qk = donate_qk
        self.inv_freq = 1.0 / (
            base ** (jnp.arange(0, head_dim, 2, dtype=jnp.float32) / head_dim)
        )
        self._set_cos_sin_cache(max_len)

    def _set_cos_sin_cache(self, seq_len: int):
        # TODO(synk): Python-side cache growth inside __call__ is not jit-safe
        # (mirrors the eager behavior of the reference nn.Module).
        self.max_seq_len_cached = seq_len
        t = jnp.arange(seq_len, dtype=jnp.float32)
        freqs = jnp.outer(t, self.inv_freq)                  # [S, D//2]
        emb = jnp.concatenate([freqs, freqs], axis=-1)       # [S, D]
        cos = jnp.cos(emb)
        sin = jnp.sin(emb)
        self.cos_cached = cos.astype(self.dtype)
        self.sin_cached = sin.astype(self.dtype)
        # Sign-fold sin once at cache time so rotate_half reduces to a lane roll,
        # and stack with cos so the kernel sees one table operand / one DMA.
        half = self.head_dim // 2
        sin_signed = jnp.concatenate([-sin[:, :half], sin[:, half:]], axis=-1)
        self.tab_cached = jnp.stack([cos, sin_signed], axis=0).astype(self.dtype)

    def __call__(self, q, k, position_ids=None, unsqueeze_dim: int = 1):
        # q: [B, S, Hq, D], k: [B, S, Hk, D]
        # position_ids: 1-D [S] int (shared across batch), or None for arange(S).
        assert unsqueeze_dim == 1, "only the default broadcast (batch & heads) is supported"
        seq_len = q.shape[1]
        if seq_len > self.max_seq_len_cached:
            self._set_cos_sin_cache(seq_len)
        tab = self.tab_cached[:, :seq_len].astype(q.dtype)    # [2, S, D]
        if position_ids is not None:
            assert position_ids.ndim == 1 and position_ids.shape[0] == seq_len, (
                "position_ids is expected to be 1-D [seq_len] (shared across batch)")
            tab = tab[:, position_ids]                         # row gather (glue)
        return _apply_rope_fused(q, k, tab, seq_tile=self.seq_tile,
                                 donate_qk=self.donate_qk)


def _rope_reference(x, cos_sel, sin_sel):
    d = x.shape[-1]
    rot = jnp.concatenate([-x[..., d // 2:], x[..., : d // 2]], axis=-1)
    cos_b = cos_sel[None, :, None, :]
    sin_b = sin_sel[None, :, None, :]
    return x * cos_b + rot * sin_b


if __name__ == "__main__":
    key = jax.random.PRNGKey(0)
    B, S, Hq, Hk, D = 2, 16, 8, 4, 128
    max_len = 32

    kq, kk = jax.random.split(key)
    q = jax.random.normal(kq, (B, S, Hq, D), dtype=jnp.float32)
    k = jax.random.normal(kk, (B, S, Hk, D), dtype=jnp.float32)
    position_ids = jnp.arange(S, dtype=jnp.int32)

    # seq_tile=8 -> grid (S//8, B) = (2, 2): exercises seq tiling + resident tables.
    rope = TransformerRotaryEmbeddingPallas(head_dim=D, max_len=max_len, seq_tile=8)
    q_emb, k_emb = rope(q, k, position_ids)
    q_emb = jax.block_until_ready(q_emb)
    k_emb = jax.block_until_ready(k_emb)

    # Also exercise the auto-tiler path once.
    rope_auto = TransformerRotaryEmbeddingPallas(head_dim=D, max_len=max_len)
    q_emb2, k_emb2 = rope_auto(q, k, position_ids)
    q_emb2 = jax.block_until_ready(q_emb2)
    k_emb2 = jax.block_until_ready(k_emb2)

    # Correctness check against pure-JAX reference (original rotate_half formula).
    cos_sel = rope.cos_cached[:S][position_ids]
    sin_sel = rope.sin_cached[:S][position_ids]
    q_ref = _rope_reference(q, cos_sel, sin_sel)
    k_ref = _rope_reference(k, cos_sel, sin_sel)
    assert jnp.allclose(q_emb, q_ref, atol=1e-5, rtol=1e-5)
    assert jnp.allclose(k_emb, k_ref, atol=1e-5, rtol=1e-5)
    assert jnp.allclose(q_emb2, q_ref, atol=1e-5, rtol=1e-5)
    assert jnp.allclose(k_emb2, k_ref, atol=1e-5, rtol=1e-5)

    print("KERNEL_OK")
</pallas_src>

<mosaic_0001>
module attributes {stable_mosaic.version = 11 : i64} {
  func.func @_rope_qk_kernel(%arg0: i32, %arg1: i32, %arg2: memref<1x8x8x128xf32, #tpu.memory_space<vmem>>, %arg3: memref<1x8x4x128xf32, #tpu.memory_space<vmem>>, %arg4: memref<2x8x1x128xf32, #tpu.memory_space<vmem>>, %arg5: memref<1x8x8x128xf32, #tpu.memory_space<vmem>>, %arg6: memref<1x8x4x128xf32, #tpu.memory_space<vmem>>) attributes {dimension_semantics = [#tpu.dimension_semantics<parallel>, #tpu.dimension_semantics<parallel>], iteration_bounds = array<i64: 2, 2>, scalar_prefetch = 0 : i64, scratch_operands = 0 : i64, tpu.core_type = #tpu.core_type<tc>, window_params = [{transform_indices = @transform_0, window_bounds = array<i64: 1, 8, 8, 128>}, {transform_indices = @transform_1, window_bounds = array<i64: 1, 8, 4, 128>}, {transform_indices = @transform_2, window_bounds = array<i64: 2, 8, 1, 128>}, {transform_indices = @transform_3, window_bounds = array<i64: 1, 8, 8, 128>}, {transform_indices = @transform_4, window_bounds = array<i64: 1, 8, 4, 128>}]} {
    %c0 = arith.constant 0 : index
    %c0_0 = arith.constant 0 : index
    %c0_1 = arith.constant 0 : index
    %c0_2 = arith.constant 0 : index
    %0 = vector.load %arg4[%c0, %c0_0, %c0_1, %c0_2] : memref<2x8x1x128xf32, #tpu.memory_space<vmem>>, vector<1x8x1x128xf32>
    %1 = vector.shape_cast %0 : vector<1x8x1x128xf32> to vector<8x1x128xf32>
    %c1 = arith.constant 1 : index
    %c0_3 = arith.constant 0 : index
    %c0_4 = arith.constant 0 : index
    %c0_5 = arith.constant 0 : index
    %2 = vector.load %arg4[%c1, %c0_3, %c0_4, %c0_5] : memref<2x8x1x128xf32, #tpu.memory_space<vmem>>, vector<1x8x1x128xf32>
    %3 = vector.shape_cast %2 : vector<1x8x1x128xf32> to vector<8x1x128xf32>
    %c0_6 = arith.constant 0 : index
    %c0_7 = arith.constant 0 : index
    %c0_8 = arith.constant 0 : index
    %c0_9 = arith.constant 0 : index
    %4 = vector.load %arg2[%c0_6, %c0_7, %c0_8, %c0_9] : memref<1x8x8x128xf32, #tpu.memory_space<vmem>>, vector<1x8x8x128xf32>
    %5 = vector.shape_cast %4 : vector<1x8x8x128xf32> to vector<8x8x128xf32>
    %c64_i32 = arith.constant 64 : i32
    %6 = tpu.dynamic_rotate %5 by %c64_i32 dim 2 : vector<8x8x128xf32>, i32 -> vector<8x8x128xf32>
    %7 = vector.broadcast %1 : vector<8x1x128xf32> to vector<8x8x128xf32>
    %8 = arith.mulf %5, %7 : vector<8x8x128xf32>
    %9 = vector.broadcast %3 : vector<8x1x128xf32> to vector<8x8x128xf32>
    %10 = arith.mulf %6, %9 : vector<8x8x128xf32>
    %11 = arith.addf %8, %10 : vector<8x8x128xf32>
    %c0_10 = arith.constant 0 : index
    %c0_11 = arith.constant 0 : index
    %c0_12 = arith.constant 0 : index
    %c0_13 = arith.constant 0 : index
    %12 = vector.load %arg5[%c0_10, %c0_11, %c0_12, %c0_13] : memref<1x8x8x128xf32, #tpu.memory_space<vmem>>, vector<1x8x8x128xf32>
    %13 = vector.shape_cast %12 : vector<1x8x8x128xf32> to vector<8x8x128xf32>
    %14 = vector.shape_cast %11 : vector<8x8x128xf32> to vector<1x8x8x128xf32>
    tpu.vector_store %arg5[%c0_10, %c0_11, %c0_12, %c0_13], %14 {strides = array<i32>} : memref<1x8x8x128xf32, #tpu.memory_space<vmem>>, vector<1x8x8x128xf32>,
    %c0_14 = arith.constant 0 : index
    %c0_15 = arith.constant 0 : index
    %c0_16 = arith.constant 0 : index
    %c0_17 = arith.constant 0 : index
    %15 = vector.load %arg3[%c0_14, %c0_15, %c0_16, %c0_17] : memref<1x8x4x128xf32, #tpu.memory_space<vmem>>, vector<1x8x4x128xf32>
    %16 = vector.shape_cast %15 : vector<1x8x4x128xf32> to vector<8x4x128xf32>
    %c64_i32_18 = arith.constant 64 : i32
    %17 = tpu.dynamic_rotate %16 by %c64_i32_18 dim 2 : vector<8x4x128xf32>, i32 -> vector<8x4x128xf32>
    %18 = vector.broadcast %1 : vector<8x1x128xf32> to vector<8x4x128xf32>
    %19 = arith.mulf %16, %18 : vector<8x4x128xf32>
    %20 = vector.broadcast %3 : vector<8x1x128xf32> to vector<8x4x128xf32>
    %21 = arith.mulf %17, %20 : vector<8x4x128xf32>
    %22 = arith.addf %19, %21 : vector<8x4x128xf32>
    %c0_19 = arith.constant 0 : index
    %c0_20 = arith.constant 0 : index
    %c0_21 = arith.constant 0 : index
    %c0_22 = arith.constant 0 : index
    %23 = vector.load %arg6[%c0_19, %c0_20, %c0_21, %c0_22] : memref<1x8x4x128xf32, #tpu.memory_space<vmem>>, vector<1x8x4x128xf32>
    %24 = vector.shape_cast %23 : vector<1x8x4x128xf32> to vector<8x4x128xf32>
    %25 = vector.shape_cast %22 : vector<8x4x128xf32> to vector<1x8x4x128xf32>
    tpu.vector_store %arg6[%c0_19, %c0_20, %c0_21, %c0_22], %25 {strides = array<i32>} : memref<1x8x4x128xf32, #tpu.memory_space<vmem>>, vector<1x8x4x128xf32>,
    return
  }
  func.func @transform_0(%arg0: i32, %arg1: i32) -> (i32, i32, i32, i32) {
    %c0_i32 = arith.constant 0 : i32
    %c0_i32_0 = arith.constant 0 : i32
    %c0_i32_1 = arith.constant 0 : i32
    return %arg1, %arg0, %c0_i32, %c0_i32_0 : i32, i32, i32, i32
  }
  func.func @transform_1(%arg0: i32, %arg1: i32) -> (i32, i32, i32, i32) {
    %c0_i32 = arith.constant 0 : i32
    %c0_i32_0 = arith.constant 0 : i32
    %c0_i32_1 = arith.constant 0 : i32
    return %arg1, %arg0, %c0_i32, %c0_i32_0 : i32, i32, i32, i32
  }
  func.func @transform_2(%arg0: i32, %arg1: i32) -> (i32, i32, i32, i32) {
    %c0_i32 = arith.constant 0 : i32
    %c0_i32_0 = arith.constant 0 : i32
    %c0_i32_1 = arith.constant 0 : i32
    %c0_i32_2 = arith.constant 0 : i32
    return %c0_i32, %arg0, %c0_i32_0, %c0_i32_1 : i32, i32, i32, i32
  }
  func.func @transform_3(%arg0: i32, %arg1: i32) -> (i32, i32, i32, i32) {
    %c0_i32 = arith.constant 0 : i32
    %c0_i32_0 = arith.constant 0 : i32
    %c0_i32_1 = arith.constant 0 : i32
    return %arg1, %arg0, %c0_i32, %c0_i32_0 : i32, i32, i32, i32
  }
  func.func @transform_4(%arg0: i32, %arg1: i32) -> (i32, i32, i32, i32) {
    %c0_i32 = arith.constant 0 : i32
    %c0_i32_0 = arith.constant 0 : i32
    %c0_i32_1 = arith.constant 0 : i32
    return %arg1, %arg0, %c0_i32, %c0_i32_0 : i32, i32, i32, i32
  }
}

</mosaic_0001>

<llo_original>
// kernel: tpu_custom_call.1
$region0: #{tpu_custom_call.1}
  #allocation0 [shape = 'u32[]', space=smem, size = 0x4, offset = 0x4, fixed_abs, tag = 'smem constant byte address 0x4 - core index']
  #allocation1 [shape = 'u32[144,128]{1,0:T(1,128)}', space=vmem, size = 0x12000, scoped, tag = 'internal scratch']
  #allocation11 [shape = 's32[]', space=sflag, size = 0x4, offset = 0, fixed_abs, tag = 'sflag constant byte address 0x0 - dummy sync flag']
  %s0 = inlined_call_operand.hbm [shape: f32[2,16,8,128], index: 0, kind: input, shape index: {}]
  %s1 = inlined_call_operand.hbm [shape: f32[2,16,4,128], index: 1, kind: input, shape index: {}]
  %s2 = inlined_call_operand.hbm [shape: f32[2,16,1,128], index: 2, kind: input, shape index: {}]
  %s3 = inlined_call_operand.hbm [shape: f32[2,16,8,128], index: 3, kind: output, shape index: {0}]
  %s4 = inlined_call_operand.hbm [shape: f32[2,16,4,128], index: 4, kind: output, shape index: {1}]
  %5 = xla_tuple %s3, %s4
  %s6 = sld [smem:[#allocation0]]
  $region65: #{tpu_custom_call.1} parent=0
    _
  %s8 = ssub.s32 1, %s6
  %s9 = scalar_select 0, %s8, %s6
  $region1: #{tpu_custom_call.1} parent=0
    #allocation2 [shape = 'u8[65536]{0}', space=vmem, size = 0x10000, scoped, tag = 'input window, operand 0']
    #allocation3 [shape = 's32[2]{0}', space=sflag, size = 0x8, scoped, tag = 'scoped memory for tpu_custom_call.1']
    #allocation4 [shape = 's32[2]{0}', space=sflag, size = 0x8, scoped, tag = 'scoped memory for tpu_custom_call.1']
    #allocation5 [shape = 'u8[32768]{0}', space=vmem, size = 0x8000, scoped, tag = 'input window, operand 1']
    #allocation6 [shape = 's32[2]{0}', space=sflag, size = 0x8, scoped, tag = 'scoped memory for tpu_custom_call.1']
    #allocation7 [shape = 'u8[16384]{0}', space=vmem, size = 0x4000, scoped, tag = 'input window, operand 2']
    #allocation8 [shape = 'u8[65536]{0}', space=vmem, size = 0x10000, scoped, tag = 'output window, operand 0']
    #allocation9 [shape = 'u8[32768]{0}', space=vmem, size = 0x8000, scoped, tag = 'output window, operand 1']
    #allocation10 [shape = 's32[2]{0}', space=sflag, size = 0x8, scoped, tag = 'scoped memory for tpu_custom_call.1']
    %10 = vsyncpa [#allocation3], 0
    %s11 = scalar_lea.sflag [#allocation3], 1
    %12 = vsyncpa %s11, 0
    %13 = vsyncpa [#allocation6], 0
    %s14 = scalar_lea.sflag [#allocation6], 1
    %15 = vsyncpa %s14, 0
    %16 = vsyncpa [#allocation4], 0
    %s17 = scalar_lea.sflag [#allocation4], 1
    %18 = vsyncpa %s17, 0
    %19 = vsyncpa [#allocation10], 0
    %s20 = scalar_lea.sflag [#allocation10], 1
    %21 = vsyncpa %s20, 0
    loop: start=0, step=1, limit=6
    $region2: #{tpu_custom_call.1} parent=1 // loop_pre_header
      _
    $region3: #{tpu_custom_call.1} parent=1 // loop_header
      %s23 = sphi 0, %s27
      %p24 = scmp.ge.s32.totalorder %s23, 6
      %s30 = sphi 0, %s42
      %s31 = sphi 0, %s38
      %s32 = sphi 0, %s30
      %s33 = sphi 0, %s31
      %s34 = sphi 0, %s32
      %s35 = sphi 0, %s33
      %s47 = sphi 0, %s49
      %s50 = sphi 0, %s47
      %s51 = sphi 0, %s50
      %s67 = sphi 0, %s51
      %s75 = sphi 0, %s77
      %s78 = sphi 0, %s75
      %s79 = sphi 0, %s78
      %s95 = sphi 0, %s79
      %s101 = sphi 0, %s103
      %s104 = sphi 0, %s101
      %s105 = sphi 0, %s104
      %s121 = sphi 0, %s105
      %s129 = sphi 0, %s131
      %s132 = sphi 0, %s129
      %s133 = sphi 0, %s132
      %s149 = sphi 0, %s133
      %s157 = sphi 0, %s159
      %s160 = sphi 0, %s157
      %s161 = sphi 0, %s160
      %s177 = sphi 0, %s161
    $region4: #{tpu_custom_call.1} parent=1 // loop_header_branch
      %26 = sbr.rel (%p24) target = $region8
    $region5: #{tpu_custom_call.1} parent=1 // loop_body
      %s28 = ssub.s32 %s23, 1
      %s29 = ssub.s32 %s23, 2
      %s36 = sadd.s32 1, %s31
      %p37 = scmp.ge.s32.totalorder %s36, 2
      %s38 = scalar_select %p37, 0, %s36
      %s39 = sadd.s32 1, %s30
      %s40 = scalar_select %p37, %s39, %s30
      %p41 = scmp.ge.s32.totalorder %s40, 2
      %s42 = scalar_select %p41, 0, %s40
      %s43 = ssub.s32 %s31, %s38
      %s44 = ssub.s32 %s30, %s42
      %s45 = sor.u32 %s43, %s44
      %p46 = scmp.eq.s32.totalorder %s45, 0
      %s48 = sadd.s32 %s47, 1
      %s49 = scalar_select %p46, %s47, %s48
      %p52 = pneg %p46
      %p53 = scmp.eq.s32.totalorder %s23, 3
      %p54 = por %p52, %p53
      %p55 = scmp.ne.s32.totalorder %s47, %s50
      %p56 = scmp.eq.s32.totalorder %s23, 0
      %p57 = por %p55, %p56
      %p58 = scmp.ne.s32.totalorder %s47, %s50
      %p59 = scmp.eq.s32.totalorder %s28, 3
      %p60 = por %p58, %p59
      %p61 = scmp.ne.s32.totalorder %s50, %s51
      %p62 = scmp.eq.s32.totalorder %s28, 0
      %p63 = por %p61, %p62
      %p64 = scmp.ne.s32.totalorder %s50, %s51
      %p65 = scmp.eq.s32.totalorder %s29, 3
      %p66 = por %p64, %p65
      %p68 = scmp.ne.s32.totalorder %s51, %s67
      %p69 = scmp.eq.s32.totalorder %s29, 0
      %p70 = por %p68, %p69
      %s71 = ssub.s32 %s31, %s38
      %s72 = ssub.s32 %s30, %s42
      %s73 = sor.u32 %s71, %s72
      %p74 = scmp.eq.s32.totalorder %s73, 0
      %s76 = sadd.s32 %s75, 1
      %s77 = scalar_select %p74, %s75, %s76
      %p80 = pneg %p74
      %p81 = scmp.eq.s32.totalorder %s23, 3
      %p82 = por %p80, %p81
      %p83 = scmp.ne.s32.totalorder %s75, %s78
      %p84 = scmp.eq.s32.totalorder %s23, 0
      %p85 = por %p83, %p84
      %p86 = scmp.ne.s32.totalorder %s75, %s78
      %p87 = scmp.eq.s32.totalorder %s28, 3
      %p88 = por %p86, %p87
      %p89 = scmp.ne.s32.totalorder %s78, %s79
      %p90 = scmp.eq.s32.totalorder %s28, 0
      %p91 = por %p89, %p90
      %p92 = scmp.ne.s32.totalorder %s78, %s79
      %p93 = scmp.eq.s32.totalorder %s29, 3
      %p94 = por %p92, %p93
      %p96 = scmp.ne.s32.totalorder %s79, %s95
      %p97 = scmp.eq.s32.totalorder %s29, 0
      %p98 = por %p96, %p97
      %s99 = ssub.s32 %s30, %s42
      %p100 = scmp.eq.s32.totalorder %s99, 0
      %s102 = sadd.s32 %s101, 1
      %s103 = scalar_select %p100, %s101, %s102
      %p106 = pneg %p100
      %p107 = scmp.eq.s32.totalorder %s23, 3
      %p108 = por %p106, %p107
      %p109 = scmp.ne.s32.totalorder %s101, %s104
      %p110 = scmp.eq.s32.totalorder %s23, 0
      %p111 = por %p109, %p110
      %p112 = scmp.ne.s32.totalorder %s101, %s104
      %p113 = scmp.eq.s32.totalorder %s28, 3
      %p114 = por %p112, %p113
      %p115 = scmp.ne.s32.totalorder %s104, %s105
      %p116 = scmp.eq.s32.totalorder %s28, 0
      %p117 = por %p115, %p116
      %p118 = scmp.ne.s32.totalorder %s104, %s105
      %p119 = scmp.eq.s32.totalorder %s29, 3
      %p120 = por %p118, %p119
      %p122 = scmp.ne.s32.totalorder %s105, %s121
      %p123 = scmp.eq.s32.totalorder %s29, 0
      %p124 = por %p122, %p123
      %s125 = ssub.s32 %s31, %s38
      %s126 = ssub.s32 %s30, %s42
      %s127 = sor.u32 %s125, %s126
      %p128 = scmp.eq.s32.totalorder %s127, 0
      %s130 = sadd.s32 %s129, 1
      %s131 = scalar_select %p128, %s129, %s130
      %p134 = pneg %p128
      %p135 = scmp.eq.s32.totalorder %s23, 3
      %p136 = por %p134, %p135
      %p137 = scmp.ne.s32.totalorder %s129, %s132
      %p138 = scmp.eq.s32.totalorder %s23, 0
      %p139 = por %p137, %p138
      %p140 = scmp.ne.s32.totalorder %s129, %s132
      %p141 = scmp.eq.s32.totalorder %s28, 3
      %p142 = por %p140, %p141
      %p143 = scmp.ne.s32.totalorder %s132, %s133
      %p144 = scmp.eq.s32.totalorder %s28, 0
      %p145 = por %p143, %p144
      %p146 = scmp.ne.s32.totalorder %s132, %s133
      %p147 = scmp.eq.s32.totalorder %s29, 3
      %p148 = por %p146, %p147
      %p150 = scmp.ne.s32.totalorder %s133, %s149
      %p151 = scmp.eq.s32.totalorder %s29, 0
      %p152 = por %p150, %p151
      %s153 = ssub.s32 %s31, %s38
      %s154 = ssub.s32 %s30, %s42
      %s155 = sor.u32 %s153, %s154
      %p156 = scmp.eq.s32.totalorder %s155, 0
      %s158 = sadd.s32 %s157, 1
      %s159 = scalar_select %p156, %s157, %s158
      %p162 = pneg %p156
      %p163 = scmp.eq.s32.totalorder %s23, 3
      %p164 = por %p162, %p163
      %p165 = scmp.ne.s32.totalorder %s157, %s160
      %p166 = scmp.eq.s32.totalorder %s23, 0
      %p167 = por %p165, %p166
      %p168 = scmp.ne.s32.totalorder %s157, %s160
      %p169 = scmp.eq.s32.totalorder %s28, 3
      %p170 = por %p168, %p169
      %p171 = scmp.ne.s32.totalorder %s160, %s161
      %p172 = scmp.eq.s32.totalorder %s28, 0
      %p173 = por %p171, %p172
      %p174 = scmp.ne.s32.totalorder %s160, %s161
      %p175 = scmp.eq.s32.totalorder %s29, 3
      %p176 = por %p174, %p175
      %p178 = scmp.ne.s32.totalorder %s161, %s177
      %p179 = scmp.eq.s32.totalorder %s29, 0
      %p180 = por %p178, %p179
      %p181 = scmp.le.s32.totalorder 1, %s23
      %p182 = scmp.lt.s32.totalorder %s23, 5
      %p183 = pnand %p181, %p182
      %p184 = pneg %p183
      // Predicated region
      $region9: #{tpu_custom_call.1} parent=5 // pred_check
        _
      $region10: #{tpu_custom_call.1} parent=5 // pred_check_branch
        %186 = sbr.rel (%p183) target = $region12
      $region11: #{tpu_custom_call.1} parent=5 // pred_region
        %s187 = ssub.s32 %s23, 1
      $region12: #{tpu_custom_call.1} parent=5 // pred_fallthru
        _
      %p188 = scmp.lt.s32.totalorder %s23, 4
      // Predicated region
      $region13: #{tpu_custom_call.1} parent=5 // pred_check
        %p189 = pneg %p188
      $region14: #{tpu_custom_call.1} parent=5 // pred_check_branch
        %191 = sbr.rel (%p189) target = $region16
      $region15: #{tpu_custom_call.1} parent=5 // pred_region
        // Predicated region
        $region17: #{tpu_custom_call.1} parent=15 // pred_check
          %p192 = pneg %p57
        $region18: #{tpu_custom_call.1} parent=15 // pred_check_branch
          %194 = sbr.rel (%p192) target = $region20
        $region19: #{tpu_custom_call.1} parent=15 // pred_region
          %s195 = sand.u32 %s47, 1
          %s196 = scalar_lea.sflag [#allocation3], %s195
          %s197 = sand.u32 %s47, 1
          %s198 = smul.addr %s197, 64
          %s199 = scalar_lea.vmem [#allocation2], %s198
          %s200 = smul.u32 8, %s30
          %s202 = ssub.s32 1024, 1024
          %203 = vsyncadd %s196, %s202
          %s204 = smul.addr %s31, 16
          %s205 = sadd.s32 %s200, %s204
          %s206 = smul.addr %s205, 128
          %s207 = scalar_lea.hbm %s0, %s206
          %s208 = sshll.u32 %s199, 4
          %s209 = int_to_ptr.vmem [resolvable:$true] %s208
          %214 = dma.hbm_to_vmem [thread:$0]  %s207, 1024, %s209, %s196, 128, 128, 8
        $region20: #{tpu_custom_call.1} parent=15 // pred_fallthru
          _
        // Predicated region
        $region21: #{tpu_custom_call.1} parent=15 // pred_check
          %p215 = pneg %p85
        $region22: #{tpu_custom_call.1} parent=15 // pred_check_branch
          %217 = sbr.rel (%p215) target = $region24
        $region23: #{tpu_custom_call.1} parent=15 // pred_region
          %s218 = sand.u32 %s23, 1
          %s219 = scalar_lea.sflag [#allocation6], %s218
          %s220 = sand.u32 %s75, 1
          %s221 = smul.addr %s220, 32
          %s222 = scalar_lea.vmem [#allocation5], %s221
          %s223 = smul.u32 8, %s30
          %s225 = ssub.s32 512, 512
          %226 = vsyncadd %s219, %s225
          %s227 = smul.addr %s31, 16
          %s228 = sadd.s32 %s223, %s227
          %s229 = smul.addr %s228, 64
          %s230 = scalar_lea.hbm %s1, %s229
          %s231 = sshll.u32 %s222, 4
          %s232 = int_to_ptr.vmem [resolvable:$true] %s231
          %237 = dma.hbm_to_vmem [thread:$0]  %s230, 512, %s232, %s219, 64, 64, 4
        $region24: #{tpu_custom_call.1} parent=15 // pred_fallthru
          _
        // Predicated region
        $region25: #{tpu_custom_call.1} parent=15 // pred_check
          %p238 = pneg %p111
        $region26: #{tpu_custom_call.1} parent=15 // pred_check_branch
          %240 = sbr.rel (%p238) target = $region28
        $region27: #{tpu_custom_call.1} parent=15 // pred_region
          #allocation12 [shape = 'u32[6]{0}', space=smem, size = 0x18, scoped, tag = 'DMA stride descriptor']
          %s241 = sand.u32 %s23, 1
          %s242 = scalar_lea.sflag [#allocation6], %s241
          %s243 = sand.u32 %s101, 1
          %s244 = smul.addr %s243, 16
          %s245 = scalar_lea.vmem [#allocation7], %s244
          %s246 = smul.u32 8, %s30
          %s248 = ssub.s32 256, 256
          %249 = vsyncadd %s242, %s248
          %s250 = smul.addr %s246, 16
          %s251 = scalar_lea.hbm %s2, %s250
          %s253 = sshll.u32 1, 14
          %s254 = sxor.u32 4294967295, %s253
          %s256 = sld [smem:[#allocation0]]
          %s257 = sadd.s32 2, %s256
          %s259 = sshll.u32 7, 26
          %s260 = sxor.u32 4294967295, %s259
          %s261 = sand.u32 0, %s260
          %s262 = sshll.u32 %s257, 26
          %s263 = sor.u32 %s261, %s262
          %s264 = sshll.u32 %s245, 4
          %s265 = int_to_ptr.vmem [resolvable:$true] %s264
          %271 = sst [smem:[#allocation12]] 256
          %s272 = scalar_lea.smem [#allocation12], 1
          %273 = sst [smem:[%s272]] 128
          %s274 = scalar_lea.smem [#allocation12], 2
          %275 = sst [smem:[%s274]] 8
          %s276 = scalar_lea.smem [#allocation12], 3
          %277 = sst [smem:[%s276]] 16
          %s278 = scalar_lea.smem [#allocation12], 4
          %279 = sst [smem:[%s278]] 16
          %s280 = scalar_lea.smem [#allocation12], 5
          %281 = sst [smem:[%s280]] 1
          %283 = dma.general %s251, 256, %s265, %s242, 131072, [#allocation12], %s263, 0
        $region28: #{tpu_custom_call.1} parent=15 // pred_fallthru
          _
      $region16: #{tpu_custom_call.1} parent=5 // pred_fallthru
        _
      %p284 = scmp.le.s32.totalorder 1, %s23
      %p285 = scmp.lt.s32.totalorder %s23, 5
      %p286 = pnand %p284, %p285
      %p287 = pneg %p286
      // Predicated region
      $region29: #{tpu_custom_call.1} parent=5 // pred_check
        _
      $region30: #{tpu_custom_call.1} parent=5 // pred_check_branch
        %289 = sbr.rel (%p286) target = $region32
      $region31: #{tpu_custom_call.1} parent=5 // pred_region
        %s290 = ssub.s32 %s23, 1
        %s291 = sand.u32 %s50, 1
        %s292 = scalar_lea.sflag [#allocation3], %s291
        %s293 = sand.u32 %s50, 1
        %s294 = smul.addr %s293, 64
        %s295 = scalar_lea.vmem [#allocation2], %s294
        // Predicated region
        $region33: #{tpu_custom_call.1} parent=31 // pred_check
          %p296 = pneg %p63
        $region34: #{tpu_custom_call.1} parent=31 // pred_check_branch
          %298 = sbr.rel (%p296) target = $region36
        $region35: #{tpu_custom_call.1} parent=31 // pred_region
          %299 = dma.done %s292, 1024
        $region36: #{tpu_custom_call.1} parent=31 // pred_fallthru
          _
        %s300 = sand.u32 %s28, 1
        %s301 = scalar_lea.sflag [#allocation6], %s300
        %s302 = sand.u32 %s78, 1
        %s303 = smul.addr %s302, 32
        %s304 = scalar_lea.vmem [#allocation5], %s303
        // Predicated region
        $region37: #{tpu_custom_call.1} parent=31 // pred_check
          %p305 = pneg %p91
        $region38: #{tpu_custom_call.1} parent=31 // pred_check_branch
          %307 = sbr.rel (%p305) target = $region40
        $region39: #{tpu_custom_call.1} parent=31 // pred_region
          %308 = dma.done %s301, 512
        $region40: #{tpu_custom_call.1} parent=31 // pred_fallthru
          _
        %s309 = sand.u32 %s28, 1
        %s310 = scalar_lea.sflag [#allocation6], %s309
        %s311 = sand.u32 %s104, 1
        %s312 = smul.addr %s311, 16
        %s313 = scalar_lea.vmem [#allocation7], %s312
        // Predicated region
        $region41: #{tpu_custom_call.1} parent=31 // pred_check
          %p314 = pneg %p117
        $region42: #{tpu_custom_call.1} parent=31 // pred_check_branch
          %316 = sbr.rel (%p314) target = $region44
        $region43: #{tpu_custom_call.1} parent=31 // pred_region
          %317 = dma.done %s310, 256
        $region44: #{tpu_custom_call.1} parent=31 // pred_fallthru
          _
        %s318 = sand.u32 %s50, 1
        %s319 = scalar_lea.sflag [#allocation3], %s318
        %s320 = sand.u32 %s50, 1
        %s321 = smul.addr %s320, 64
        %s322 = scalar_lea.vmem [#allocation2], %s321
        %p323 = pneg %p63
        %p324 = pneg %p60
        %s325 = sand.u32 %s28, 1
        %s326 = scalar_lea.sflag [#allocation6], %s325
        %s327 = sand.u32 %s78, 1
        %s328 = smul.addr %s327, 32
        %s329 = scalar_lea.vmem [#allocation5], %s328
        %p330 = pneg %p91
        %p331 = pneg %p88
        %s332 = sand.u32 %s28, 1
        %s333 = scalar_lea.sflag [#allocation6], %s332
        %s334 = sand.u32 %s104, 1
        %s335 = smul.addr %s334, 16
        %s336 = scalar_lea.vmem [#allocation7], %s335
        %p337 = pneg %p117
        %p338 = pneg %p114
        %p339 = pneg %p145
        %p340 = pneg %p142
        %s341 = sand.u32 %s132, 1
        %s342 = scalar_lea.sflag [#allocation4], %s341
        %s343 = sand.u32 %s132, 1
        %s344 = smul.addr %s343, 64
        %s345 = scalar_lea.vmem [#allocation8], %s344
        %p346 = pneg %p173
        %p347 = pneg %p170
        %s348 = sand.u32 %s160, 1
        %s349 = scalar_lea.sflag [#allocation10], %s348
        %s350 = sand.u32 %s160, 1
        %s351 = smul.addr %s350, 32
        %s352 = scalar_lea.vmem [#allocation9], %s351
        %s353 = smul.u32 8, %s32
        %s354 = smul.u32 8, %s32
        %s355 = smul.u32 8, %s32
        %s356 = smul.u32 8, %s32
        %s357 = smul.u32 8, %s32
        %v358 = vld [vmem:[%s313] sm:$0x1]
        %v359 = vld [vmem:[%s313 + $0x1] sm:$0x1]
        %v360 = vld [vmem:[%s313 + $0x2] sm:$0x1]
        %v361 = vld [vmem:[%s313 + $0x3] sm:$0x1]
        %v362 = vld [vmem:[%s313 + $0x4] sm:$0x1]
        %v363 = vld [vmem:[%s313 + $0x5] sm:$0x1]
        %v364 = vld [vmem:[%s313 + $0x6] sm:$0x1]
        %v365 = vld [vmem:[%s313 + $0x7] sm:$0x1]
        %s366 = scalar_lea.vmem %s313, 8 [#allocation7]
        %v367 = vld [vmem:[%s366] sm:$0x1]
        %v368 = vld [vmem:[%s366 + $0x1] sm:$0x1]
        %v369 = vld [vmem:[%s366 + $0x2] sm:$0x1]
        %v370 = vld [vmem:[%s366 + $0x3] sm:$0x1]
        %v371 = vld [vmem:[%s366 + $0x4] sm:$0x1]
        %v372 = vld [vmem:[%s366 + $0x5] sm:$0x1]
        %v373 = vld [vmem:[%s366 + $0x6] sm:$0x1]
        %v374 = vld [vmem:[%s366 + $0x7] sm:$0x1]
        %v375 = vld [vmem:[%s295] sm:$0xff]
        %v376 = vld [vmem:[%s295 + $0x8] sm:$0xff]
        %v377 = vld [vmem:[%s295 + $0x10] sm:$0xff]
        %v378 = vld [vmem:[%s295 + $0x18] sm:$0xff]
        %v379 = vld [vmem:[%s295 + $0x20] sm:$0xff]
        %v380 = vld [vmem:[%s295 + $0x28] sm:$0xff]
        %v381 = vld [vmem:[%s295 + $0x30] sm:$0xff]
        %v382 = vld [vmem:[%s295 + $0x38] sm:$0xff]
        %383 = vrot.lane.b32.xlu0 %v375, 64
        %v384 = vpop.permute.xlu0 %383
        %385 = vrot.lane.b32.xlu0 %v376, 64
        %v386 = vpop.permute.xlu0 %385
        %387 = vrot.lane.b32.xlu0 %v377, 64
        %v388 = vpop.permute.xlu0 %387
        %389 = vrot.lane.b32.xlu0 %v378, 64
        %v390 = vpop.permute.xlu0 %389
        %391 = vrot.lane.b32.xlu0 %v379, 64
        %v392 = vpop.permute.xlu0 %391
        %393 = vrot.lane.b32.xlu0 %v380, 64
        %v394 = vpop.permute.xlu0 %393
        %395 = vrot.lane.b32.xlu0 %v381, 64
        %v396 = vpop.permute.xlu0 %395
        %397 = vrot.lane.b32.xlu0 %v382, 64
        %v398 = vpop.permute.xlu0 %397
        %v407 = vlaneseq
        %v408 = vshrl.u32 %v407, 7
        %v409 = vsub.s32 0, %v408
        %v410 = vrot.slane %v358, %v409
        %v411 = vlaneseq
        %v412 = vshrl.u32 %v411, 7
        %v413 = vsub.s32 0, %v412
        %v414 = vrot.slane %v359, %v413
        %v415 = vlaneseq
        %v416 = vshrl.u32 %v415, 7
        %v417 = vsub.s32 0, %v416
        %v418 = vrot.slane %v360, %v417
        %v419 = vlaneseq
        %v420 = vshrl.u32 %v419, 7
        %v421 = vsub.s32 0, %v420
        %v422 = vrot.slane %v361, %v421
        %v423 = vlaneseq
        %v424 = vshrl.u32 %v423, 7
        %v425 = vsub.s32 0, %v424
        %v426 = vrot.slane %v362, %v425
        %v427 = vlaneseq
        %v428 = vshrl.u32 %v427, 7
        %v429 = vsub.s32 0, %v428
        %v430 = vrot.slane %v363, %v429
        %v431 = vlaneseq
        %v432 = vshrl.u32 %v431, 7
        %v433 = vsub.s32 0, %v432
        %v434 = vrot.slane %v364, %v433
        %v435 = vlaneseq
        %v436 = vshrl.u32 %v435, 7
        %v437 = vsub.s32 0, %v436
        %v438 = vrot.slane %v365, %v437
        %v447 = vmul.f32 %v375, %v410
        %v448 = vmul.f32 %v376, %v414
        %v449 = vmul.f32 %v377, %v418
        %v450 = vmul.f32 %v378, %v422
        %v451 = vmul.f32 %v379, %v426
        %v452 = vmul.f32 %v380, %v430
        %v453 = vmul.f32 %v381, %v434
        %v454 = vmul.f32 %v382, %v438
        %v463 = vlaneseq
        %v464 = vshrl.u32 %v463, 7
        %v465 = vsub.s32 0, %v464
        %v466 = vrot.slane %v367, %v465
        %v467 = vlaneseq
        %v468 = vshrl.u32 %v467, 7
        %v469 = vsub.s32 0, %v468
        %v470 = vrot.slane %v368, %v469
        %v471 = vlaneseq
        %v472 = vshrl.u32 %v471, 7
        %v473 = vsub.s32 0, %v472
        %v474 = vrot.slane %v369, %v473
        %v475 = vlaneseq
        %v476 = vshrl.u32 %v475, 7
        %v477 = vsub.s32 0, %v476
        %v478 = vrot.slane %v370, %v477
        %v479 = vlaneseq
        %v480 = vshrl.u32 %v479, 7
        %v481 = vsub.s32 0, %v480
        %v482 = vrot.slane %v371, %v481
        %v483 = vlaneseq
        %v484 = vshrl.u32 %v483, 7
        %v485 = vsub.s32 0, %v484
        %v486 = vrot.slane %v372, %v485
        %v487 = vlaneseq
        %v488 = vshrl.u32 %v487, 7
        %v489 = vsub.s32 0, %v488
        %v490 = vrot.slane %v373, %v489
        %v491 = vlaneseq
        %v492 = vshrl.u32 %v491, 7
        %v493 = vsub.s32 0, %v492
        %v494 = vrot.slane %v374, %v493
        %v503 = vmul.f32 %v384, %v466
        %v504 = vmul.f32 %v386, %v470
        %v505 = vmul.f32 %v388, %v474
        %v506 = vmul.f32 %v390, %v478
        %v507 = vmul.f32 %v392, %v482
        %v508 = vmul.f32 %v394, %v486
        %v509 = vmul.f32 %v396, %v490
        %v510 = vmul.f32 %v398, %v494
        %v511 = vadd.f32 %v447, %v503
        %v512 = vadd.f32 %v448, %v504
        %v513 = vadd.f32 %v449, %v505
        %v514 = vadd.f32 %v450, %v506
        %v515 = vadd.f32 %v451, %v507
        %v516 = vadd.f32 %v452, %v508
        %v517 = vadd.f32 %v453, %v509
        %v518 = vadd.f32 %v454, %v510
        %519 = vst [vmem:[%s345] sm:$0xff] %v511
        %520 = vst [vmem:[%s345 + $0x8] sm:$0xff] %v512
        %521 = vst [vmem:[%s345 + $0x10] sm:$0xff] %v513
        %522 = vst [vmem:[%s345 + $0x18] sm:$0xff] %v514
        %523 = vst [vmem:[%s345 + $0x20] sm:$0xff] %v515
        %524 = vst [vmem:[%s345 + $0x28] sm:$0xff] %v516
        %525 = vst [vmem:[%s345 + $0x30] sm:$0xff] %v517
        %526 = vst [vmem:[%s345 + $0x38] sm:$0xff] %v518
        %v527 = vld [vmem:[%s304] sm:$0xf]
        %v528 = vld [vmem:[%s304 + $0x4] sm:$0xf]
        %v529 = vld [vmem:[%s304 + $0x8] sm:$0xf]
        %v530 = vld [vmem:[%s304 + $0xc] sm:$0xf]
        %v531 = vld [vmem:[%s304 + $0x10] sm:$0xf]
        %v532 = vld [vmem:[%s304 + $0x14] sm:$0xf]
        %v533 = vld [vmem:[%s304 + $0x18] sm:$0xf]
        %v534 = vld [vmem:[%s304 + $0x1c] sm:$0xf]
        %535 = vrot.lane.b32.xlu0 %v527, 64
        %v536 = vpop.permute.xlu0 %535
        %537 = vrot.lane.b32.xlu0 %v528, 64
        %v538 = vpop.permute.xlu0 %537
        %539 = vrot.lane.b32.xlu0 %v529, 64
        %v540 = vpop.permute.xlu0 %539
        %541 = vrot.lane.b32.xlu0 %v530, 64
        %v542 = vpop.permute.xlu0 %541
        %543 = vrot.lane.b32.xlu0 %v531, 64
        %v544 = vpop.permute.xlu0 %543
        %545 = vrot.lane.b32.xlu0 %v532, 64
        %v546 = vpop.permute.xlu0 %545
        %547 = vrot.lane.b32.xlu0 %v533, 64
        %v548 = vpop.permute.xlu0 %547
        %549 = vrot.lane.b32.xlu0 %v534, 64
        %v550 = vpop.permute.xlu0 %549
        %v551 = vmul.f32 %v527, %v410
        %v552 = vmul.f32 %v528, %v414
        %v553 = vmul.f32 %v529, %v418
        %v554 = vmul.f32 %v530, %v422
        %v555 = vmul.f32 %v531, %v426
        %v556 = vmul.f32 %v532, %v430
        %v557 = vmul.f32 %v533, %v434
        %v558 = vmul.f32 %v534, %v438
        %v559 = vmul.f32 %v536, %v466
        %v560 = vmul.f32 %v538, %v470
        %v561 = vmul.f32 %v540, %v474
        %v562 = vmul.f32 %v542, %v478
        %v563 = vmul.f32 %v544, %v482
        %v564 = vmul.f32 %v546, %v486
        %v565 = vmul.f32 %v548, %v490
        %v566 = vmul.f32 %v550, %v494
        %v567 = vadd.f32 %v551, %v559
        %v568 = vadd.f32 %v552, %v560
        %v569 = vadd.f32 %v553, %v561
        %v570 = vadd.f32 %v554, %v562
        %v571 = vadd.f32 %v555, %v563
        %v572 = vadd.f32 %v556, %v564
        %v573 = vadd.f32 %v557, %v565
        %v574 = vadd.f32 %v558, %v566
        %575 = vst [vmem:[%s352] sm:$0xf] %v567
        %576 = vst [vmem:[%s352 + $0x4] sm:$0xf] %v568
        %577 = vst [vmem:[%s352 + $0x8] sm:$0xf] %v569
        %578 = vst [vmem:[%s352 + $0xc] sm:$0xf] %v570
        %579 = vst [vmem:[%s352 + $0x10] sm:$0xf] %v571
        %580 = vst [vmem:[%s352 + $0x14] sm:$0xf] %v572
        %581 = vst [vmem:[%s352 + $0x18] sm:$0xf] %v573
        %582 = vst [vmem:[%s352 + $0x1c] sm:$0xf] %v574
        %s583 = sand.u32 %s132, 1
        %s584 = scalar_lea.sflag [#allocation4], %s583
        %s585 = sand.u32 %s132, 1
        %s586 = smul.addr %s585, 64
        %s587 = scalar_lea.vmem [#allocation8], %s586
        %s588 = sand.u32 %s160, 1
        %s589 = scalar_lea.sflag [#allocation10], %s588
        %s590 = sand.u32 %s160, 1
        %s591 = smul.addr %s590, 32
        %s592 = scalar_lea.vmem [#allocation9], %s591
        // Predicated region
        $region45: #{tpu_custom_call.1} parent=31 // pred_check
          %p593 = pneg %p142
        $region46: #{tpu_custom_call.1} parent=31 // pred_check_branch
          %595 = sbr.rel (%p593) target = $region48
        $region47: #{tpu_custom_call.1} parent=31 // pred_region
          %s596 = smul.u32 8, %s32
          %s598 = ssub.s32 1024, 1024
          %599 = vsyncadd %s584, %s598
          %s600 = smul.addr %s33, 16
          %s601 = sadd.s32 %s596, %s600
          %s602 = smul.addr %s601, 128
          %s603 = scalar_lea.hbm %s3, %s602
          %s604 = sshll.u32 %s587, 4
          %s605 = int_to_ptr.vmem [resolvable:$true] %s604
          %610 = dma.vmem_to_hbm [thread:$0]  %s605, 1024, %s603, %s584, 128, 128, 8
        $region48: #{tpu_custom_call.1} parent=31 // pred_fallthru
          _
        // Predicated region
        $region49: #{tpu_custom_call.1} parent=31 // pred_check
          %p611 = pneg %p170
        $region50: #{tpu_custom_call.1} parent=31 // pred_check_branch
          %613 = sbr.rel (%p611) target = $region52
        $region51: #{tpu_custom_call.1} parent=31 // pred_region
          %s614 = smul.u32 8, %s32
          %s616 = ssub.s32 512, 512
          %617 = vsyncadd %s589, %s616
          %s618 = smul.addr %s33, 16
          %s619 = sadd.s32 %s614, %s618
          %s620 = smul.addr %s619, 64
          %s621 = scalar_lea.hbm %s4, %s620
          %s622 = sshll.u32 %s592, 4
          %s623 = int_to_ptr.vmem [resolvable:$true] %s622
          %628 = dma.vmem_to_hbm [thread:$0]  %s623, 512, %s621, %s589, 64, 64, 4
        $region52: #{tpu_custom_call.1} parent=31 // pred_fallthru
          _
      $region32: #{tpu_custom_call.1} parent=5 // pred_fallthru
        _
      %p629 = scmp.le.s32.totalorder 2, %s23
      // Predicated region
      $region53: #{tpu_custom_call.1} parent=5 // pred_check
        %p630 = pneg %p629
      $region54: #{tpu_custom_call.1} parent=5 // pred_check_branch
        %632 = sbr.rel (%p630) target = $region56
      $region55: #{tpu_custom_call.1} parent=5 // pred_region
        %s633 = ssub.s32 %s23, 2
        // Predicated region
        $region57: #{tpu_custom_call.1} parent=55 // pred_check
          %p634 = pneg %p148
        $region58: #{tpu_custom_call.1} parent=55 // pred_check_branch
          %636 = sbr.rel (%p634) target = $region60
        $region59: #{tpu_custom_call.1} parent=55 // pred_region
          %s637 = sand.u32 %s133, 1
          %s638 = scalar_lea.sflag [#allocation4], %s637
          %s639 = sand.u32 %s133, 1
          %s640 = smul.addr %s639, 64
          %s641 = scalar_lea.vmem [#allocation8], %s640
          %642 = dma.done %s638, 1024
        $region60: #{tpu_custom_call.1} parent=55 // pred_fallthru
          _
        // Predicated region
        $region61: #{tpu_custom_call.1} parent=55 // pred_check
          %p643 = pneg %p176
        $region62: #{tpu_custom_call.1} parent=55 // pred_check_branch
          %645 = sbr.rel (%p643) target = $region64
        $region63: #{tpu_custom_call.1} parent=55 // pred_region
          %s646 = sand.u32 %s161, 1
          %s647 = scalar_lea.sflag [#allocation10], %s646
          %s648 = sand.u32 %s161, 1
          %s649 = smul.addr %s648, 32
          %s650 = scalar_lea.vmem [#allocation9], %s649
          %651 = dma.done %s647, 512
        $region64: #{tpu_custom_call.1} parent=55 // pred_fallthru
          _
      $region56: #{tpu_custom_call.1} parent=5 // pred_fallthru
        _
    $region6: #{tpu_custom_call.1} parent=1 // loop_footer
      %s27 = sadd.s32 1, %s23
    $region7: #{tpu_custom_call.1} parent=1 // loop_footer_branch
      %22 = sbr.rel target = $region3
    $region8: #{tpu_custom_call.1} parent=1 // loop_exit
      _
    %652 = vsyncpa [#allocation3], 1
    %s653 = scalar_lea.sflag [#allocation3], 1
    %654 = vsyncpa %s653, 1
    %655 = vsyncpa [#allocation6], 1
    %s656 = scalar_lea.sflag [#allocation6], 1
    %657 = vsyncpa %s656, 1
    %658 = vsyncpa [#allocation4], 1
    %s659 = scalar_lea.sflag [#allocation4], 1
    %660 = vsyncpa %s659, 1
    %661 = vsyncpa [#allocation10], 1
    %s662 = scalar_lea.sflag [#allocation10], 1
    %663 = vsyncpa %s662, 1

</llo_original>
